<compile_context>
chip_gen: v5e
topology: v5e:2x2
jax: 0.10.0
libtpu: 0.0.40
codegen_flags: <defaults>
</compile_context>

<pallas_src>
import functools

import jax
import jax.numpy as jnp
from jax.experimental import pallas as pl
from jax.experimental.pallas import tpu as pltpu

KH = KW = 3      # kernel size
C_IN = 3         # conv in-channels (fixed by the module)
C_OUT = 64       # conv out-channels (fixed by the module)
K_PAD = 32       # KH*KW*C_IN = 27 (+1 bias row) padded up to 32


def conv3x3_kernel(x_ref, w_ref, o_ref, xpad_ref, xcol_ref, *, w, base):
    # x_ref:    (N, C_IN, HW)     flattened *unpadded* images, HW = H*W (lane-dense)
    # w_ref:    (C_OUT, K_PAD)    packed weights; col 27 = bias, cols 28..31 = 0
    # o_ref:    (N, C_OUT, HW)    NCHW-native flat output (reshape-only wrapper)
    # xpad_ref: (N, C_IN, P_PAD)  scratch: zero halo + image at lane offset `base`
    # xcol_ref: (K_PAD, N*HW)     scratch: im2col matrix (+ constant-1 bias row)
    n, cin, hw = x_ref.shape
    k = KH * KW * cin

    # Column masks for the horizontally wrapping taps: with a flat row stride
    # of W, a dx=-1 tap reads the previous row's right edge at x==0 and a
    # dx=+1 tap reads the next row's left edge at x==W-1 — zero those lanes.
    col = jax.lax.broadcasted_iota(jnp.int32, (1, hw), 1) % w
    left_edge = col == 0          # mask for dx = -1 taps
    right_edge = col == (w - 1)   # mask for dx = +1 taps

    # Stage each image into the zero-filled haloed scratch with ONE aligned
    # (C_IN, HW) store (base is a multiple of 128).  Vertical out-of-range
    # taps (y<0 / y>=H) then read the zero halo automatically.
    xpad_ref[...] = jnp.zeros_like(xpad_ref)
    for b in range(n):
        xpad_ref[b, :, base:base + hw] = x_ref[b]

    # Bias row (all ones) and remaining zero rows of xcol — written once.
    width = n * hw
    xcol_ref[k:k + 1, :] = jnp.ones((1, width), jnp.float32)
    xcol_ref[k + 1:, :] = jnp.zeros((K_PAD - k - 1, width), jnp.float32)

    # im2col: each tap is a statically lane-shifted slice of the haloed image,
    # stored straight into VMEM scratch (no vreg concatenates, no XLU chain).
    taps = [(dy, dx) for dy in (-1, 0, 1) for dx in (-1, 0, 1)]
    for b in range(n):
        for t, (dy, dx) in enumerate(taps):
            off = base + dy * w + dx
            tap = xpad_ref[b, :, off:off + hw]             # (C_IN, HW)
            if dx == -1:
                tap = jnp.where(left_edge, 0.0, tap)
            elif dx == 1:
                tap = jnp.where(right_edge, 0.0, tap)
            xcol_ref[t * cin:(t + 1) * cin, b * hw:(b + 1) * hw] = tap

    # One MXU matmul for the whole batch (bias included via the ones row):
    # (C_OUT, 32) @ (32, N*HW), default (bf16) MXU passes, f32 accumulation.
    acc = jnp.dot(w_ref[...], xcol_ref[...],
                  preferred_element_type=jnp.float32)
    for b in range(n):                                     # aligned lane-tile stores
        o_ref[b] = acc[:, b * hw:(b + 1) * hw].astype(o_ref.dtype)


def prepare_conv_params(weight_oihw, bias):
    """One-time weight packing (hoisted out of the per-call path):
    (O, I, 3, 3) -> (O, 32) with column order (ky*KW + kx)*C_IN + ci,
    bias folded into column 27, columns 28..31 zero."""
    cout, cin = weight_oihw.shape[0], weight_oihw.shape[1]
    k = KH * KW * cin
    w2d = jnp.transpose(weight_oihw, (0, 2, 3, 1)).reshape(cout, k)
    return jnp.concatenate(
        [w2d, bias.reshape(cout, 1),
         jnp.zeros((cout, K_PAD - k - 1), w2d.dtype)], axis=1)


def conv2d_3x3_same(x_nchw, w2d):
    """Pallas conv matching nn.Conv2d(3, 64, kernel_size=3, padding=1)."""
    n, cin, h, w = x_nchw.shape
    assert cin == C_IN
    cout = w2d.shape[0]
    hw = h * w
    # Lane-dense flat spatial axis (16*16 = 256).  For other sizes, pad HW to a
    # multiple of 128 in the caller / tile the flat axis with its own grid dim.
    assert hw % 128 == 0, "flat spatial extent must be lane-aligned"
    base = max(128, pl.cdiv(w + 1, 128) * 128)        # lane-aligned halo offset
    p_pad = pl.cdiv(base + hw + w + 1, 128) * 128     # haloed flat-image length

    x_flat = x_nchw.reshape(n, cin, hw)               # metadata-only reshape

    kernel = functools.partial(conv3x3_kernel, w=w, base=base)
    out = pl.pallas_call(
        kernel,
        out_shape=jax.ShapeDtypeStruct((n, cout, hw), jnp.float32),
        grid=(1,),
        in_specs=[
            pl.BlockSpec((n, cin, hw), lambda i: (0, 0, 0)),
            pl.BlockSpec((cout, K_PAD), lambda i: (0, 0)),
        ],
        out_specs=pl.BlockSpec((n, cout, hw), lambda i: (0, 0, 0)),
        scratch_shapes=[
            pltpu.VMEM((n, cin, p_pad), jnp.float32),   # haloed flat images
            pltpu.VMEM((K_PAD, n * hw), jnp.float32),   # im2col matrix
        ],
        compiler_params=pltpu.CompilerParams(
            dimension_semantics=("arbitrary",)),
    )(x_flat, w2d)

    return out.reshape(n, cout, h, w)                  # metadata-only reshape


if __name__ == "__main__":
    key = jax.random.PRNGKey(0)
    kx, kw, kb = jax.random.split(key, 3)

    # Small NCHW input consistent with Conv2d(3, 64, ...): (batch=2, C=3, 16, 16)
    x = jax.random.normal(kx, (2, C_IN, 16, 16), dtype=jnp.float32)

    # Deterministic parameter init (PyTorch-style uniform(-1/sqrt(fan_in), +)).
    fan_in = C_IN * KH * KW
    bound = 1.0 / (fan_in ** 0.5)
    weight = jax.random.uniform(kw, (C_OUT, C_IN, KH, KW), jnp.float32,
                                minval=-bound, maxval=bound)
    bias = jax.random.uniform(kb, (C_OUT,), jnp.float32,
                              minval=-bound, maxval=bound)

    w2d = prepare_conv_params(weight, bias)            # one-time packing
    conv = jax.jit(conv2d_3x3_same)

    out = jax.block_until_ready(conv(x, w2d))

    # Cross-check against XLA's conv.  Tolerance is looser than before because
    # the kernel now uses the default (bf16-operand) MXU path instead of
    # Precision.HIGHEST f32 emulation.
    ref = jax.lax.conv_general_dilated(
        x, weight, window_strides=(1, 1), padding=((1, 1), (1, 1)),
        dimension_numbers=("NCHW", "OIHW", "NCHW")) + bias[None, :, None, None]
    assert out.shape == (2, C_OUT, 16, 16)
    assert jnp.allclose(out, ref, atol=2e-2, rtol=2e-2), "mismatch vs lax conv"

    print("KERNEL_OK")
</pallas_src>

<mosaic_0001>
module attributes {stable_mosaic.version = 11 : i64} {
  func.func @conv3x3_kernel(%arg0: i32, %arg1: memref<2x3x256xf32, #tpu.memory_space<vmem>>, %arg2: memref<64x32xf32, #tpu.memory_space<vmem>>, %arg3: memref<2x64x256xf32, #tpu.memory_space<vmem>>, %arg4: memref<2x3x512xf32, #tpu.memory_space<vmem>>, %arg5: memref<32x512xf32, #tpu.memory_space<vmem>>) attributes {dimension_semantics = [#tpu.dimension_semantics<arbitrary>], iteration_bounds = array<i64: 1>, scalar_prefetch = 0 : i64, scratch_operands = 2 : i64, tpu.core_type = #tpu.core_type<tc>, window_params = [{pipeline_mode = #tpu.pipeline_mode<synchronous>, transform_indices = @transform_0, window_bounds = array<i64: 2, 3, 256>}, {pipeline_mode = #tpu.pipeline_mode<synchronous>, transform_indices = @transform_1, window_bounds = array<i64: 64, 32>}, {pipeline_mode = #tpu.pipeline_mode<synchronous>, transform_indices = @transform_2, window_bounds = array<i64: 2, 64, 256>}]} {
    %0 = tpu.iota {dimensions = array<i32: 1>} : vector<1x256xi32>
    %c16_i32 = arith.constant 16 : i32
    %c0_i32 = arith.constant 0 : i32
    %1 = arith.cmpi eq, %c16_i32, %c0_i32 : i32
    %c1_i32 = arith.constant 1 : i32
    %2 = arith.select %1, %c1_i32, %c16_i32 : i32
    %3 = vector.broadcast %2 : i32 to vector<1x256xi32>
    %4 = arith.remsi %0, %3 : vector<1x256xi32>
    %c0_i32_0 = arith.constant 0 : i32
    %5 = vector.broadcast %c0_i32_0 : i32 to vector<1x256xi32>
    %6 = arith.cmpi ne, %4, %5 : vector<1x256xi32>
    %c0_i32_1 = arith.constant 0 : i32
    %7 = vector.broadcast %c0_i32_1 : i32 to vector<1x256xi32>
    %8 = arith.cmpi slt, %4, %7 : vector<1x256xi32>
    %c0_i32_2 = arith.constant 0 : i32
    %9 = arith.cmpi slt, %2, %c0_i32_2 : i32
    %10 = vector.broadcast %9 : i1 to vector<1x256xi1>
    %11 = vector.broadcast %10 : vector<1x256xi1> to vector<1x256xi1>
    %12 = arith.xori %8, %11 : vector<1x256xi1>
    %13 = arith.andi %12, %6 : vector<1x256xi1>
    %14 = vector.broadcast %2 : i32 to vector<1x256xi32>
    %15 = arith.addi %4, %14 : vector<1x256xi32>
    %16 = arith.select %13, %15, %4 : vector<1x256xi1>, vector<1x256xi32>
    %c0_i32_3 = arith.constant 0 : i32
    %17 = vector.broadcast %c0_i32_3 : i32 to vector<1x256xi32>
    %18 = arith.cmpi eq, %16, %17 : vector<1x256xi32>
    %c15_i32 = arith.constant 15 : i32
    %19 = vector.broadcast %c15_i32 : i32 to vector<1x256xi32>
    %20 = arith.cmpi eq, %16, %19 : vector<1x256xi32>
    %cst = arith.constant 0.000000e+00 : f32
    %21 = vector.broadcast %cst : f32 to vector<2x3x512xf32>
    %c0 = arith.constant 0 : index
    %c0_4 = arith.constant 0 : index
    %c0_5 = arith.constant 0 : index
    %22 = vector.load %arg4[%c0, %c0_4, %c0_5] : memref<2x3x512xf32, #tpu.memory_space<vmem>>, vector<2x3x512xf32>
    tpu.vector_store %arg4[%c0, %c0_4, %c0_5], %21 {strides = array<i32>} : memref<2x3x512xf32, #tpu.memory_space<vmem>>, vector<2x3x512xf32>,
    %c0_6 = arith.constant 0 : index
    %c0_7 = arith.constant 0 : index
    %c0_8 = arith.constant 0 : index
    %23 = vector.load %arg1[%c0_6, %c0_7, %c0_8] : memref<2x3x256xf32, #tpu.memory_space<vmem>>, vector<1x3x256xf32>
    %24 = vector.shape_cast %23 : vector<1x3x256xf32> to vector<3x256xf32>
    %c0_9 = arith.constant 0 : index
    %c0_10 = arith.constant 0 : index
    %c128 = arith.constant 128 : index
    %25 = vector.load %arg4[%c0_9, %c0_10, %c128] : memref<2x3x512xf32, #tpu.memory_space<vmem>>, vector<1x3x256xf32>
    %26 = vector.shape_cast %25 : vector<1x3x256xf32> to vector<3x256xf32>
    %27 = vector.shape_cast %24 : vector<3x256xf32> to vector<1x3x256xf32>
    tpu.vector_store %arg4[%c0_9, %c0_10, %c128], %27 {strides = array<i32>} : memref<2x3x512xf32, #tpu.memory_space<vmem>>, vector<1x3x256xf32>,
    %c1 = arith.constant 1 : index
    %c0_11 = arith.constant 0 : index
    %c0_12 = arith.constant 0 : index
    %28 = vector.load %arg1[%c1, %c0_11, %c0_12] : memref<2x3x256xf32, #tpu.memory_space<vmem>>, vector<1x3x256xf32>
    %29 = vector.shape_cast %28 : vector<1x3x256xf32> to vector<3x256xf32>
    %c1_13 = arith.constant 1 : index
    %c0_14 = arith.constant 0 : index
    %c128_15 = arith.constant 128 : index
    %30 = vector.load %arg4[%c1_13, %c0_14, %c128_15] : memref<2x3x512xf32, #tpu.memory_space<vmem>>, vector<1x3x256xf32>
    %31 = vector.shape_cast %30 : vector<1x3x256xf32> to vector<3x256xf32>
    %32 = vector.shape_cast %29 : vector<3x256xf32> to vector<1x3x256xf32>
    tpu.vector_store %arg4[%c1_13, %c0_14, %c128_15], %32 {strides = array<i32>} : memref<2x3x512xf32, #tpu.memory_space<vmem>>, vector<1x3x256xf32>,
    %cst_16 = arith.constant 1.000000e+00 : f32
    %33 = vector.broadcast %cst_16 : f32 to vector<1x512xf32>
    %c27 = arith.constant 27 : index
    %c0_17 = arith.constant 0 : index
    %34 = vector.load %arg5[%c27, %c0_17] : memref<32x512xf32, #tpu.memory_space<vmem>>, vector<1x512xf32>
    tpu.vector_store %arg5[%c27, %c0_17], %33 {strides = array<i32>} : memref<32x512xf32, #tpu.memory_space<vmem>>, vector<1x512xf32>,
    %cst_18 = arith.constant 0.000000e+00 : f32
    %35 = vector.broadcast %cst_18 : f32 to vector<4x512xf32>
    %c28 = arith.constant 28 : index
    %c0_19 = arith.constant 0 : index
    %36 = vector.load %arg5[%c28, %c0_19] : memref<32x512xf32, #tpu.memory_space<vmem>>, vector<4x512xf32>
    tpu.vector_store %arg5[%c28, %c0_19], %35 {strides = array<i32>} : memref<32x512xf32, #tpu.memory_space<vmem>>, vector<4x512xf32>,
    %c0_20 = arith.constant 0 : index
    %c0_21 = arith.constant 0 : index
    %c111 = arith.constant 111 : index
    %37 = vector.load %arg4[%c0_20, %c0_21, %c111] : memref<2x3x512xf32, #tpu.memory_space<vmem>>, vector<1x3x256xf32>
    %38 = vector.shape_cast %37 : vector<1x3x256xf32> to vector<3x256xf32>
    %cst_22 = arith.constant 0.000000e+00 : f32
    %39 = vector.shape_cast %18 : vector<1x256xi1> to vector<1x256xi1>
    %40 = vector.broadcast %39 : vector<1x256xi1> to vector<3x256xi1>
    %41 = vector.broadcast %cst_22 : f32 to vector<3x256xf32>
    %42 = arith.select %40, %41, %38 : vector<3x256xi1>, vector<3x256xf32>
    %c0_23 = arith.constant 0 : index
    %c0_24 = arith.constant 0 : index
    %43 = vector.load %arg5[%c0_23, %c0_24] : memref<32x512xf32, #tpu.memory_space<vmem>>, vector<3x256xf32>
    tpu.vector_store %arg5[%c0_23, %c0_24], %42 {strides = array<i32>} : memref<32x512xf32, #tpu.memory_space<vmem>>, vector<3x256xf32>,
    %c0_25 = arith.constant 0 : index
    %c0_26 = arith.constant 0 : index
    %c112 = arith.constant 112 : index
    %44 = vector.load %arg4[%c0_25, %c0_26, %c112] : memref<2x3x512xf32, #tpu.memory_space<vmem>>, vector<1x3x256xf32>
    %45 = vector.shape_cast %44 : vector<1x3x256xf32> to vector<3x256xf32>
    %c3 = arith.constant 3 : index
    %c0_27 = arith.constant 0 : index
    %46 = vector.load %arg5[%c3, %c0_27] : memref<32x512xf32, #tpu.memory_space<vmem>>, vector<3x256xf32>
    tpu.vector_store %arg5[%c3, %c0_27], %45 {strides = array<i32>} : memref<32x512xf32, #tpu.memory_space<vmem>>, vector<3x256xf32>,
    %c0_28 = arith.constant 0 : index
    %c0_29 = arith.constant 0 : index
    %c113 = arith.constant 113 : index
    %47 = vector.load %arg4[%c0_28, %c0_29, %c113] : memref<2x3x512xf32, #tpu.memory_space<vmem>>, vector<1x3x256xf32>
    %48 = vector.shape_cast %47 : vector<1x3x256xf32> to vector<3x256xf32>
    %cst_30 = arith.constant 0.000000e+00 : f32
    %49 = vector.shape_cast %20 : vector<1x256xi1> to vector<1x256xi1>
    %50 = vector.broadcast %49 : vector<1x256xi1> to vector<3x256xi1>
    %51 = vector.broadcast %cst_30 : f32 to vector<3x256xf32>
    %52 = arith.select %50, %51, %48 : vector<3x256xi1>, vector<3x256xf32>
    %c6 = arith.constant 6 : index
    %c0_31 = arith.constant 0 : index
    %53 = vector.load %arg5[%c6, %c0_31] : memref<32x512xf32, #tpu.memory_space<vmem>>, vector<3x256xf32>
    tpu.vector_store %arg5[%c6, %c0_31], %52 {strides = array<i32>} : memref<32x512xf32, #tpu.memory_space<vmem>>, vector<3x256xf32>,
    %c0_32 = arith.constant 0 : index
    %c0_33 = arith.constant 0 : index
    %c127 = arith.constant 127 : index
    %54 = vector.load %arg4[%c0_32, %c0_33, %c127] : memref<2x3x512xf32, #tpu.memory_space<vmem>>, vector<1x3x256xf32>
    %55 = vector.shape_cast %54 : vector<1x3x256xf32> to vector<3x256xf32>
    %cst_34 = arith.constant 0.000000e+00 : f32
    %56 = vector.shape_cast %18 : vector<1x256xi1> to vector<1x256xi1>
    %57 = vector.broadcast %56 : vector<1x256xi1> to vector<3x256xi1>
    %58 = vector.broadcast %cst_34 : f32 to vector<3x256xf32>
    %59 = arith.select %57, %58, %55 : vector<3x256xi1>, vector<3x256xf32>
    %c9 = arith.constant 9 : index
    %c0_35 = arith.constant 0 : index
    %60 = vector.load %arg5[%c9, %c0_35] : memref<32x512xf32, #tpu.memory_space<vmem>>, vector<3x256xf32>
    tpu.vector_store %arg5[%c9, %c0_35], %59 {strides = array<i32>} : memref<32x512xf32, #tpu.memory_space<vmem>>, vector<3x256xf32>,
    %c0_36 = arith.constant 0 : index
    %c0_37 = arith.constant 0 : index
    %c128_38 = arith.constant 128 : index
    %61 = vector.load %arg4[%c0_36, %c0_37, %c128_38] : memref<2x3x512xf32, #tpu.memory_space<vmem>>, vector<1x3x256xf32>
    %62 = vector.shape_cast %61 : vector<1x3x256xf32> to vector<3x256xf32>
    %c12 = arith.constant 12 : index
    %c0_39 = arith.constant 0 : index
    %63 = vector.load %arg5[%c12, %c0_39] : memref<32x512xf32, #tpu.memory_space<vmem>>, vector<3x256xf32>
    tpu.vector_store %arg5[%c12, %c0_39], %62 {strides = array<i32>} : memref<32x512xf32, #tpu.memory_space<vmem>>, vector<3x256xf32>,
    %c0_40 = arith.constant 0 : index
    %c0_41 = arith.constant 0 : index
    %c129 = arith.constant 129 : index
    %64 = vector.load %arg4[%c0_40, %c0_41, %c129] : memref<2x3x512xf32, #tpu.memory_space<vmem>>, vector<1x3x256xf32>
    %65 = vector.shape_cast %64 : vector<1x3x256xf32> to vector<3x256xf32>
    %cst_42 = arith.constant 0.000000e+00 : f32
    %66 = vector.shape_cast %20 : vector<1x256xi1> to vector<1x256xi1>
    %67 = vector.broadcast %66 : vector<1x256xi1> to vector<3x256xi1>
    %68 = vector.broadcast %cst_42 : f32 to vector<3x256xf32>
    %69 = arith.select %67, %68, %65 : vector<3x256xi1>, vector<3x256xf32>
    %c15 = arith.constant 15 : index
    %c0_43 = arith.constant 0 : index
    %70 = vector.load %arg5[%c15, %c0_43] : memref<32x512xf32, #tpu.memory_space<vmem>>, vector<3x256xf32>
    tpu.vector_store %arg5[%c15, %c0_43], %69 {strides = array<i32>} : memref<32x512xf32, #tpu.memory_space<vmem>>, vector<3x256xf32>,
    %c0_44 = arith.constant 0 : index
    %c0_45 = arith.constant 0 : index
    %c143 = arith.constant 143 : index
    %71 = vector.load %arg4[%c0_44, %c0_45, %c143] : memref<2x3x512xf32, #tpu.memory_space<vmem>>, vector<1x3x256xf32>
    %72 = vector.shape_cast %71 : vector<1x3x256xf32> to vector<3x256xf32>
    %cst_46 = arith.constant 0.000000e+00 : f32
    %73 = vector.shape_cast %18 : vector<1x256xi1> to vector<1x256xi1>
    %74 = vector.broadcast %73 : vector<1x256xi1> to vector<3x256xi1>
    %75 = vector.broadcast %cst_46 : f32 to vector<3x256xf32>
    %76 = arith.select %74, %75, %72 : vector<3x256xi1>, vector<3x256xf32>
    %c18 = arith.constant 18 : index
    %c0_47 = arith.constant 0 : index
    %77 = vector.load %arg5[%c18, %c0_47] : memref<32x512xf32, #tpu.memory_space<vmem>>, vector<3x256xf32>
    tpu.vector_store %arg5[%c18, %c0_47], %76 {strides = array<i32>} : memref<32x512xf32, #tpu.memory_space<vmem>>, vector<3x256xf32>,
    %c0_48 = arith.constant 0 : index
    %c0_49 = arith.constant 0 : index
    %c144 = arith.constant 144 : index
    %78 = vector.load %arg4[%c0_48, %c0_49, %c144] : memref<2x3x512xf32, #tpu.memory_space<vmem>>, vector<1x3x256xf32>
    %79 = vector.shape_cast %78 : vector<1x3x256xf32> to vector<3x256xf32>
    %c21 = arith.constant 21 : index
    %c0_50 = arith.constant 0 : index
    %80 = vector.load %arg5[%c21, %c0_50] : memref<32x512xf32, #tpu.memory_space<vmem>>, vector<3x256xf32>
    tpu.vector_store %arg5[%c21, %c0_50], %79 {strides = array<i32>} : memref<32x512xf32, #tpu.memory_space<vmem>>, vector<3x256xf32>,
    %c0_51 = arith.constant 0 : index
    %c0_52 = arith.constant 0 : index
    %c145 = arith.constant 145 : index
    %81 = vector.load %arg4[%c0_51, %c0_52, %c145] : memref<2x3x512xf32, #tpu.memory_space<vmem>>, vector<1x3x256xf32>
    %82 = vector.shape_cast %81 : vector<1x3x256xf32> to vector<3x256xf32>
    %cst_53 = arith.constant 0.000000e+00 : f32
    %83 = vector.shape_cast %20 : vector<1x256xi1> to vector<1x256xi1>
    %84 = vector.broadcast %83 : vector<1x256xi1> to vector<3x256xi1>
    %85 = vector.broadcast %cst_53 : f32 to vector<3x256xf32>
    %86 = arith.select %84, %85, %82 : vector<3x256xi1>, vector<3x256xf32>
    %c24 = arith.constant 24 : index
    %c0_54 = arith.constant 0 : index
    %87 = vector.load %arg5[%c24, %c0_54] : memref<32x512xf32, #tpu.memory_space<vmem>>, vector<3x256xf32>
    tpu.vector_store %arg5[%c24, %c0_54], %86 {strides = array<i32>} : memref<32x512xf32, #tpu.memory_space<vmem>>, vector<3x256xf32>,
    %c1_55 = arith.constant 1 : index
    %c0_56 = arith.constant 0 : index
    %c111_57 = arith.constant 111 : index
    %88 = vector.load %arg4[%c1_55, %c0_56, %c111_57] : memref<2x3x512xf32, #tpu.memory_space<vmem>>, vector<1x3x256xf32>
    %89 = vector.shape_cast %88 : vector<1x3x256xf32> to vector<3x256xf32>
    %cst_58 = arith.constant 0.000000e+00 : f32
    %90 = vector.shape_cast %18 : vector<1x256xi1> to vector<1x256xi1>
    %91 = vector.broadcast %90 : vector<1x256xi1> to vector<3x256xi1>
    %92 = vector.broadcast %cst_58 : f32 to vector<3x256xf32>
    %93 = arith.select %91, %92, %89 : vector<3x256xi1>, vector<3x256xf32>
    %c0_59 = arith.constant 0 : index
    %c256 = arith.constant 256 : index
    %94 = vector.load %arg5[%c0_59, %c256] : memref<32x512xf32, #tpu.memory_space<vmem>>, vector<3x256xf32>
    tpu.vector_store %arg5[%c0_59, %c256], %93 {strides = array<i32>} : memref<32x512xf32, #tpu.memory_space<vmem>>, vector<3x256xf32>,
    %c1_60 = arith.constant 1 : index
    %c0_61 = arith.constant 0 : index
    %c112_62 = arith.constant 112 : index
    %95 = vector.load %arg4[%c1_60, %c0_61, %c112_62] : memref<2x3x512xf32, #tpu.memory_space<vmem>>, vector<1x3x256xf32>
    %96 = vector.shape_cast %95 : vector<1x3x256xf32> to vector<3x256xf32>
    %c3_63 = arith.constant 3 : index
    %c256_64 = arith.constant 256 : index
    %97 = vector.load %arg5[%c3_63, %c256_64] : memref<32x512xf32, #tpu.memory_space<vmem>>, vector<3x256xf32>
    tpu.vector_store %arg5[%c3_63, %c256_64], %96 {strides = array<i32>} : memref<32x512xf32, #tpu.memory_space<vmem>>, vector<3x256xf32>,
    %c1_65 = arith.constant 1 : index
    %c0_66 = arith.constant 0 : index
    %c113_67 = arith.constant 113 : index
    %98 = vector.load %arg4[%c1_65, %c0_66, %c113_67] : memref<2x3x512xf32, #tpu.memory_space<vmem>>, vector<1x3x256xf32>
    %99 = vector.shape_cast %98 : vector<1x3x256xf32> to vector<3x256xf32>
    %cst_68 = arith.constant 0.000000e+00 : f32
    %100 = vector.shape_cast %20 : vector<1x256xi1> to vector<1x256xi1>
    %101 = vector.broadcast %100 : vector<1x256xi1> to vector<3x256xi1>
    %102 = vector.broadcast %cst_68 : f32 to vector<3x256xf32>
    %103 = arith.select %101, %102, %99 : vector<3x256xi1>, vector<3x256xf32>
    %c6_69 = arith.constant 6 : index
    %c256_70 = arith.constant 256 : index
    %104 = vector.load %arg5[%c6_69, %c256_70] : memref<32x512xf32, #tpu.memory_space<vmem>>, vector<3x256xf32>
    tpu.vector_store %arg5[%c6_69, %c256_70], %103 {strides = array<i32>} : memref<32x512xf32, #tpu.memory_space<vmem>>, vector<3x256xf32>,
    %c1_71 = arith.constant 1 : index
    %c0_72 = arith.constant 0 : index
    %c127_73 = arith.constant 127 : index
    %105 = vector.load %arg4[%c1_71, %c0_72, %c127_73] : memref<2x3x512xf32, #tpu.memory_space<vmem>>, vector<1x3x256xf32>
    %106 = vector.shape_cast %105 : vector<1x3x256xf32> to vector<3x256xf32>
    %cst_74 = arith.constant 0.000000e+00 : f32
    %107 = vector.shape_cast %18 : vector<1x256xi1> to vector<1x256xi1>
    %108 = vector.broadcast %107 : vector<1x256xi1> to vector<3x256xi1>
    %109 = vector.broadcast %cst_74 : f32 to vector<3x256xf32>
    %110 = arith.select %108, %109, %106 : vector<3x256xi1>, vector<3x256xf32>
    %c9_75 = arith.constant 9 : index
    %c256_76 = arith.constant 256 : index
    %111 = vector.load %arg5[%c9_75, %c256_76] : memref<32x512xf32, #tpu.memory_space<vmem>>, vector<3x256xf32>
    tpu.vector_store %arg5[%c9_75, %c256_76], %110 {strides = array<i32>} : memref<32x512xf32, #tpu.memory_space<vmem>>, vector<3x256xf32>,
    %c1_77 = arith.constant 1 : index
    %c0_78 = arith.constant 0 : index
    %c128_79 = arith.constant 128 : index
    %112 = vector.load %arg4[%c1_77, %c0_78, %c128_79] : memref<2x3x512xf32, #tpu.memory_space<vmem>>, vector<1x3x256xf32>
    %113 = vector.shape_cast %112 : vector<1x3x256xf32> to vector<3x256xf32>
    %c12_80 = arith.constant 12 : index
    %c256_81 = arith.constant 256 : index
    %114 = vector.load %arg5[%c12_80, %c256_81] : memref<32x512xf32, #tpu.memory_space<vmem>>, vector<3x256xf32>
    tpu.vector_store %arg5[%c12_80, %c256_81], %113 {strides = array<i32>} : memref<32x512xf32, #tpu.memory_space<vmem>>, vector<3x256xf32>,
    %c1_82 = arith.constant 1 : index
    %c0_83 = arith.constant 0 : index
    %c129_84 = arith.constant 129 : index
    %115 = vector.load %arg4[%c1_82, %c0_83, %c129_84] : memref<2x3x512xf32, #tpu.memory_space<vmem>>, vector<1x3x256xf32>
    %116 = vector.shape_cast %115 : vector<1x3x256xf32> to vector<3x256xf32>
    %cst_85 = arith.constant 0.000000e+00 : f32
    %117 = vector.shape_cast %20 : vector<1x256xi1> to vector<1x256xi1>
    %118 = vector.broadcast %117 : vector<1x256xi1> to vector<3x256xi1>
    %119 = vector.broadcast %cst_85 : f32 to vector<3x256xf32>
    %120 = arith.select %118, %119, %116 : vector<3x256xi1>, vector<3x256xf32>
    %c15_86 = arith.constant 15 : index
    %c256_87 = arith.constant 256 : index
    %121 = vector.load %arg5[%c15_86, %c256_87] : memref<32x512xf32, #tpu.memory_space<vmem>>, vector<3x256xf32>
    tpu.vector_store %arg5[%c15_86, %c256_87], %120 {strides = array<i32>} : memref<32x512xf32, #tpu.memory_space<vmem>>, vector<3x256xf32>,
    %c1_88 = arith.constant 1 : index
    %c0_89 = arith.constant 0 : index
    %c143_90 = arith.constant 143 : index
    %122 = vector.load %arg4[%c1_88, %c0_89, %c143_90] : memref<2x3x512xf32, #tpu.memory_space<vmem>>, vector<1x3x256xf32>
    %123 = vector.shape_cast %122 : vector<1x3x256xf32> to vector<3x256xf32>
    %cst_91 = arith.constant 0.000000e+00 : f32
    %124 = vector.shape_cast %18 : vector<1x256xi1> to vector<1x256xi1>
    %125 = vector.broadcast %124 : vector<1x256xi1> to vector<3x256xi1>
    %126 = vector.broadcast %cst_91 : f32 to vector<3x256xf32>
    %127 = arith.select %125, %126, %123 : vector<3x256xi1>, vector<3x256xf32>
    %c18_92 = arith.constant 18 : index
    %c256_93 = arith.constant 256 : index
    %128 = vector.load %arg5[%c18_92, %c256_93] : memref<32x512xf32, #tpu.memory_space<vmem>>, vector<3x256xf32>
    tpu.vector_store %arg5[%c18_92, %c256_93], %127 {strides = array<i32>} : memref<32x512xf32, #tpu.memory_space<vmem>>, vector<3x256xf32>,
    %c1_94 = arith.constant 1 : index
    %c0_95 = arith.constant 0 : index
    %c144_96 = arith.constant 144 : index
    %129 = vector.load %arg4[%c1_94, %c0_95, %c144_96] : memref<2x3x512xf32, #tpu.memory_space<vmem>>, vector<1x3x256xf32>
    %130 = vector.shape_cast %129 : vector<1x3x256xf32> to vector<3x256xf32>
    %c21_97 = arith.constant 21 : index
    %c256_98 = arith.constant 256 : index
    %131 = vector.load %arg5[%c21_97, %c256_98] : memref<32x512xf32, #tpu.memory_space<vmem>>, vector<3x256xf32>
    tpu.vector_store %arg5[%c21_97, %c256_98], %130 {strides = array<i32>} : memref<32x512xf32, #tpu.memory_space<vmem>>, vector<3x256xf32>,
    %c1_99 = arith.constant 1 : index
    %c0_100 = arith.constant 0 : index
    %c145_101 = arith.constant 145 : index
    %132 = vector.load %arg4[%c1_99, %c0_100, %c145_101] : memref<2x3x512xf32, #tpu.memory_space<vmem>>, vector<1x3x256xf32>
    %133 = vector.shape_cast %132 : vector<1x3x256xf32> to vector<3x256xf32>
    %cst_102 = arith.constant 0.000000e+00 : f32
    %134 = vector.shape_cast %20 : vector<1x256xi1> to vector<1x256xi1>
    %135 = vector.broadcast %134 : vector<1x256xi1> to vector<3x256xi1>
    %136 = vector.broadcast %cst_102 : f32 to vector<3x256xf32>
    %137 = arith.select %135, %136, %133 : vector<3x256xi1>, vector<3x256xf32>
    %c24_103 = arith.constant 24 : index
    %c256_104 = arith.constant 256 : index
    %138 = vector.load %arg5[%c24_103, %c256_104] : memref<32x512xf32, #tpu.memory_space<vmem>>, vector<3x256xf32>
    tpu.vector_store %arg5[%c24_103, %c256_104], %137 {strides = array<i32>} : memref<32x512xf32, #tpu.memory_space<vmem>>, vector<3x256xf32>,
    %c0_105 = arith.constant 0 : index
    %c0_106 = arith.constant 0 : index
    %139 = vector.load %arg2[%c0_105, %c0_106] : memref<64x32xf32, #tpu.memory_space<vmem>>, vector<64x32xf32>
    %c0_107 = arith.constant 0 : index
    %c0_108 = arith.constant 0 : index
    %140 = vector.load %arg5[%c0_107, %c0_108] : memref<32x512xf32, #tpu.memory_space<vmem>>, vector<32x512xf32>
    %cst_109 = arith.constant dense<0.000000e+00> : vector<64x512xf32>
    %141 = tpu.matmul %139, %140, %cst_109 {dimension_numbers = #tpu.dot_dimension_numbers<[1], [0], [0], [1], [0, 0, 1, 1], [], []>} : vector<64x32xf32>, vector<32x512xf32>, vector<64x512xf32> -> vector<64x512xf32>
    %142 = vector.extract_strided_slice %141 {offsets = [0, 0], sizes = [64, 256], strides = [1, 1]} : vector<64x512xf32> to vector<64x256xf32>
    %c0_110 = arith.constant 0 : index
    %c0_111 = arith.constant 0 : index
    %c0_112 = arith.constant 0 : index
    %143 = vector.load %arg3[%c0_110, %c0_111, %c0_112] : memref<2x64x256xf32, #tpu.memory_space<vmem>>, vector<1x64x256xf32>
    %144 = vector.shape_cast %143 : vector<1x64x256xf32> to vector<64x256xf32>
    %145 = vector.shape_cast %142 : vector<64x256xf32> to vector<1x64x256xf32>
    tpu.vector_store %arg3[%c0_110, %c0_111, %c0_112], %145 {strides = array<i32>} : memref<2x64x256xf32, #tpu.memory_space<vmem>>, vector<1x64x256xf32>,
    %146 = vector.extract_strided_slice %141 {offsets = [0, 256], sizes = [64, 256], strides = [1, 1]} : vector<64x512xf32> to vector<64x256xf32>
    %c1_113 = arith.constant 1 : index
    %c0_114 = arith.constant 0 : index
    %c0_115 = arith.constant 0 : index
    %147 = vector.load %arg3[%c1_113, %c0_114, %c0_115] : memref<2x64x256xf32, #tpu.memory_space<vmem>>, vector<1x64x256xf32>
    %148 = vector.shape_cast %147 : vector<1x64x256xf32> to vector<64x256xf32>
    %149 = vector.shape_cast %146 : vector<64x256xf32> to vector<1x64x256xf32>
    tpu.vector_store %arg3[%c1_113, %c0_114, %c0_115], %149 {strides = array<i32>} : memref<2x64x256xf32, #tpu.memory_space<vmem>>, vector<1x64x256xf32>,
    return
  }
  func.func @transform_0(%arg0: i32) -> (i32, i32, i32) {
    %c0_i32 = arith.constant 0 : i32
    %c0_i32_0 = arith.constant 0 : i32
    %c0_i32_1 = arith.constant 0 : i32
    %c0_i32_2 = arith.constant 0 : i32
    return %c0_i32, %c0_i32_0, %c0_i32_1 : i32, i32, i32
  }
  func.func @transform_1(%arg0: i32) -> (i32, i32) {
    %c0_i32 = arith.constant 0 : i32
    %c0_i32_0 = arith.constant 0 : i32
    %c0_i32_1 = arith.constant 0 : i32
    return %c0_i32, %c0_i32_0 : i32, i32
  }
  func.func @transform_2(%arg0: i32) -> (i32, i32, i32) {
    %c0_i32 = arith.constant 0 : i32
    %c0_i32_0 = arith.constant 0 : i32
    %c0_i32_1 = arith.constant 0 : i32
    %c0_i32_2 = arith.constant 0 : i32
    return %c0_i32, %c0_i32_0, %c0_i32_1 : i32, i32, i32
  }
}

</mosaic_0001>

<llo_original>
// kernel: conv2d_3x3_same.1
$region0: #{conv2d_3x3_same.1}
  #allocation0 [shape = 'u32[]', space=smem, size = 0x4, offset = 0x4, fixed_abs, tag = 'smem constant byte address 0x4 - core index']
  #allocation1 [shape = 'u32[72,128]{1,0:T(1,128)}', space=vmem, size = 0x9000, scoped, tag = 'internal scratch']
  #allocation2 [shape = 'f32[2,3,512]{2,1,0:T(4,128)}', space=vmem, size = 0x4000, scoped, tag = 'scratch operand']
  #allocation3 [shape = 'f32[32,512]{1,0:T(8,128)}', space=vmem, size = 0x10000, scoped, tag = 'scratch operand']
  %s0 = inlined_call_operand.vmem [shape: f32[2,3,256], index: 0, kind: input, shape index: {}]
  %s1 = inlined_call_operand.vmem [shape: f32[64,32], index: 1, kind: input, shape index: {}]
  %s2 = inlined_call_operand.vmem [shape: f32[2,64,256], index: 2, kind: output, shape index: {}]
  %s3 = sld [smem:[#allocation0]]
  $region18: #{conv2d_3x3_same.1} parent=0
    _
  %s5 = ssub.s32 1, %s3
  %s6 = scalar_select 0, %s5, %s3
  // Predicated region
  $region2: #{conv2d_3x3_same.1} parent=0 // pred_check
    _
  $region3: #{conv2d_3x3_same.1} parent=0 // pred_check_branch
    %8 = sbr.rel (0) target = $region5
  $region4: #{conv2d_3x3_same.1} parent=0 // pred_region
    _
  $region5: #{conv2d_3x3_same.1} parent=0 // pred_fallthru
    _
  // Predicated region
  $region6: #{conv2d_3x3_same.1} parent=0 // pred_check
    _
  $region7: #{conv2d_3x3_same.1} parent=0 // pred_check_branch
    %10 = sbr.rel (0) target = $region9
  $region8: #{conv2d_3x3_same.1} parent=0 // pred_region
    _
  $region9: #{conv2d_3x3_same.1} parent=0 // pred_fallthru
    _
  %v11 = vlaneseq
  %v12 = vand.u32 %v11, 127
  %v13 = vadd.s32 %v12, 128
  %vm14 = vcmp.lt.s32.totalorder %v12, 0
  %v15 = vsub.s32 0, %v12
  %v16 = vsel %vm14, %v15, %v12
  %v17 = vshrl.u32 %v16, 4
  %v18 = vand.u32 %v16, 15
  %v19 = vsub.s32 0, %v18
  %v20 = vsel %vm14, %v19, %v18
  %vm21 = vcmp.lt.s32.totalorder %v13, 0
  %v22 = vsub.s32 0, %v13
  %v23 = vsel %vm21, %v22, %v13
  %v24 = vshrl.u32 %v23, 4
  %v25 = vand.u32 %v23, 15
  %v26 = vsub.s32 0, %v25
  %v27 = vsel %vm21, %v26, %v25
  %vm28 = vcmp.ne.s32.totalorder %v20, 0
  %vm29 = vcmp.ne.s32.totalorder %v27, 0
  %vm30 = vcmp.lt.s32.totalorder %v20, 0
  %vm31 = vcmp.lt.s32.totalorder %v27, 0
  %vm32 = vmand %vm30, %vm28
  %vm33 = vmand %vm31, %vm29
  %v34 = vadd.s32 %v20, 16
  %v35 = vadd.s32 %v27, 16
  %v36 = vsel %vm32, %v34, %v20
  %v37 = vsel %vm33, %v35, %v27
  %vm38 = vcmp.eq.s32.totalorder %v36, 0
  %vm39 = vcmp.eq.s32.totalorder %v37, 0
  %vm40 = vcmp.eq.s32.totalorder %v36, 15
  %vm41 = vcmp.eq.s32.totalorder %v37, 15
  %42 = vst [vmem:[#allocation2] sm:$0x77] 0.0
  %43 = vst [vmem:[#allocation2 + $0x8] sm:$0x77] 0.0
  %44 = vst [vmem:[#allocation2 + $0x10] sm:$0x77] 0.0
  %45 = vst [vmem:[#allocation2 + $0x18] sm:$0x77] 0.0
  %v46 = vld [vmem:[%s0] sm:$0x77]
  %47 = vst [vmem:[#allocation2 + $0x4] sm:$0x77] %v46
  %s48 = scalar_lea.vmem %s0, 8
  %v49 = vld [vmem:[%s48] sm:$0x77]
  %s50 = scalar_lea.vmem [#allocation2], 16
  %51 = vst [vmem:[%s50 + $0x4] sm:$0x77] %v49
  %v52 = vlaneseq
  %vm53 = vcmp.ge.s32.totalorder %v52, 0
  %vm54 = vcmp.lt.s32.totalorder %v52, 512
  %vm55 = vmand %vm53, %vm54
  %s56 = scalar_lea.vmem [#allocation3], 99
  %57 = vst.msk [vmem:[%s56] ss:$8 sm:$0xf] %vm55, 1.0
  %58 = vst.msk [vmem:[%s56] ss:$8 sm:$0x0] %vm55, 1.0
  %59 = vst [vmem:[#allocation3 + $0x60] sm:$0xf0] 0.0
  %60 = vst [vmem:[#allocation3 + $0x68] sm:$0xf0] 0.0
  %61 = vst [vmem:[#allocation3 + $0x70] sm:$0xf0] 0.0
  %62 = vst [vmem:[#allocation3 + $0x78] sm:$0xf0] 0.0
  %v63 = vld [vmem:[#allocation2] sm:$0x77]
  %v64 = vld [vmem:[#allocation2 + $0x8] sm:$0x7]
  %v65 = vsel %vm38, 1, 0
  %v66 = vsel %vm39, 1, 0
  %vm67 = vcmp.eq.s32.totalorder %v65, 1
  %vm68 = vcmp.eq.s32.totalorder %v66, 1
  %71 = vst [vmem:[#allocation1] ss:$2 sm:$0xff] %v63
  %s72 = scalar_lea.vmem [#allocation1], 16
  %73 = vst [vmem:[%s72] ss:$2 sm:$0xff] %v64
  %v74 = vld.sshfl [vmem:[#allocation1] sm:$0xff pattern:$0x75316420]
  %v75 = vld.sshfl [vmem:[#allocation1 + $0x8] sm:$0xff pattern:$0x75316420]
  %v76 = vld.sshfl [vmem:[#allocation1 + $0x10] sm:$0xff pattern:$0x75316420]
  %77 = vrot.lane.b32.xlu0 %v74, 17
  %v78 = vpop.permute.xlu0 %77
  %79 = vrot.lane.b32.xlu0 %v75, 17
  %v80 = vpop.permute.xlu0 %79
  %81 = vrot.lane.b32.xlu0 %v76, 17
  %v82 = vpop.permute.xlu0 %81
  %vm83 = vcmask 138240
  %v84 = vsel %vm83, %v78, %v80
  %v85 = vsel %vm83, %v80, %v82
  %v88 = vsel %vm67, 0.0, %v84
  %v89 = vsel %vm68, 0.0, %v85
  %90 = vst [vmem:[#allocation3] sm:$0x7] %v88
  %91 = vst [vmem:[#allocation3 + $0x8] sm:$0x7] %v89
  %v92 = vld [vmem:[#allocation2] sm:$0x77]
  %v93 = vld [vmem:[#allocation2 + $0x8] sm:$0x7]
  %96 = vst [vmem:[#allocation1] ss:$2 sm:$0xff] %v92
  %s97 = scalar_lea.vmem [#allocation1], 16
  %98 = vst [vmem:[%s97] ss:$2 sm:$0xff] %v93
  %v99 = vld.sshfl [vmem:[#allocation1] sm:$0xff pattern:$0x75316420]
  %v100 = vld.sshfl [vmem:[#allocation1 + $0x8] sm:$0xff pattern:$0x75316420]
  %v101 = vld.sshfl [vmem:[#allocation1 + $0x10] sm:$0xff pattern:$0x75316420]
  %v102 = vrot.slane %v99, 5
  %v103 = vrot.slane %v100, 5
  %v104 = vrot.slane %v101, 5
  %105 = vrot.lane.b32.xlu0 %v102, 16
  %v106 = vpop.permute.xlu0 %105
  %107 = vrot.lane.b32.xlu0 %v103, 16
  %v108 = vpop.permute.xlu0 %107
  %109 = vrot.lane.b32.xlu0 %v104, 16
  %v110 = vpop.permute.xlu0 %109
  %vm111 = vcmask 130048
  %v112 = vsel %vm111, %v106, %v108
  %v113 = vsel %vm111, %v108, %v110
  %116 = vst [vmem:[#allocation3] sm:$0x38] %v112
  %117 = vst [vmem:[#allocation3 + $0x8] sm:$0x38] %v113
  %v118 = vld [vmem:[#allocation2] sm:$0x77]
  %v119 = vld [vmem:[#allocation2 + $0x8] sm:$0x7]
  %v120 = vsel %vm40, 1, 0
  %v121 = vsel %vm41, 1, 0
  %vm122 = vcmp.eq.s32.totalorder %v120, 1
  %vm123 = vcmp.eq.s32.totalorder %v121, 1
  %126 = vst [vmem:[#allocation1] ss:$2 sm:$0xff] %v118
  %s127 = scalar_lea.vmem [#allocation1], 16
  %128 = vst [vmem:[%s127] ss:$2 sm:$0xff] %v119
  %v129 = vld.sshfl [vmem:[#allocation1] sm:$0xff pattern:$0x75316420]
  %v130 = vld.sshfl [vmem:[#allocation1 + $0x8] sm:$0xff pattern:$0x75316420]
  %v131 = vld.sshfl [vmem:[#allocation1 + $0x10] sm:$0xff pattern:$0x75316420]
  %132 = vrot.lane.b32.xlu0 %v129, 15
  %v133 = vpop.permute.xlu0 %132
  %134 = vrot.lane.b32.xlu0 %v130, 15
  %v135 = vpop.permute.xlu0 %134
  %136 = vrot.lane.b32.xlu0 %v131, 15
  %v137 = vpop.permute.xlu0 %136
  %vm138 = vcmask 121856
  %v139 = vsel %vm138, %v133, %v135
  %v140 = vsel %vm138, %v135, %v137
  %v143 = vsel %vm122, 0.0, %v139
  %v144 = vsel %vm123, 0.0, %v140
  %v147 = vrot.slane %v143, 2
  %v148 = vrot.slane %v144, 2
  %151 = vst [vmem:[#allocation3] sm:$0xc0] %v147
  %152 = vst [vmem:[#allocation3 + $0x8] sm:$0xc0] %v148
  %153 = vst [vmem:[#allocation3 + $0x20] sm:$0x1] %v147
  %154 = vst [vmem:[#allocation3 + $0x28] sm:$0x1] %v148
  %v155 = vld [vmem:[#allocation2] sm:$0x77]
  %v156 = vld [vmem:[#allocation2 + $0x8] sm:$0x7]
  %159 = vst [vmem:[#allocation1] ss:$2 sm:$0xff] %v155
  %s160 = scalar_lea.vmem [#allocation1], 16
  %161 = vst [vmem:[%s160] ss:$2 sm:$0xff] %v156
  %v162 = vld.sshfl [vmem:[#allocation1] sm:$0xff pattern:$0x75316420]
  %v163 = vld.sshfl [vmem:[#allocation1 + $0x8] sm:$0xff pattern:$0x75316420]
  %v164 = vld.sshfl [vmem:[#allocation1 + $0x10] sm:$0xff pattern:$0x75316420]
  %165 = vrot.lane.b32.xlu0 %v162, 1
  %v166 = vpop.permute.xlu0 %165
  %167 = vrot.lane.b32.xlu0 %v163, 1
  %v168 = vpop.permute.xlu0 %167
  %169 = vrot.lane.b32.xlu0 %v164, 1
  %v170 = vpop.permute.xlu0 %169
  %vm171 = vcmask 7168
  %v172 = vsel %vm171, %v166, %v168
  %v173 = vsel %vm171, %v168, %v170
  %v176 = vsel %vm67, 0.0, %v172
  %v177 = vsel %vm68, 0.0, %v173
  %v180 = vrot.slane %v176, 7
  %v181 = vrot.slane %v177, 7
  %184 = vst [vmem:[#allocation3 + $0x20] sm:$0xe] %v180
  %185 = vst [vmem:[#allocation3 + $0x28] sm:$0xe] %v181
  %v186 = vld [vmem:[#allocation2 + $0x4] sm:$0x77]
  %s188 = scalar_lea.vmem [#allocation1], 1
  %189 = vst [vmem:[%s188] ss:$2 sm:$0xff] %v186
  %v190 = vld.sshfl [vmem:[#allocation1] sm:$0xff pattern:$0x75316420]
  %v191 = vld.sshfl [vmem:[#allocation1 + $0x8] sm:$0xff pattern:$0x75316420]
  %194 = vst [vmem:[#allocation3 + $0x20] sm:$0x70] %v190
  %195 = vst [vmem:[#allocation3 + $0x28] sm:$0x70] %v191
  %v196 = vld [vmem:[#allocation2 + $0x4] sm:$0x77]
  %v197 = vld [vmem:[#allocation2 + $0xc] sm:$0x7]
  %200 = vst [vmem:[#allocation1] ss:$2 sm:$0xff] %v196
  %s201 = scalar_lea.vmem [#allocation1], 16
  %202 = vst [vmem:[%s201] ss:$2 sm:$0xff] %v197
  %v203 = vld.sshfl [vmem:[#allocation1] sm:$0xff pattern:$0x75316420]
  %v204 = vld.sshfl [vmem:[#allocation1 + $0x8] sm:$0xff pattern:$0x75316420]
  %v205 = vld.sshfl [vmem:[#allocation1 + $0x10] sm:$0xff pattern:$0x75316420]
  %206 = vrot.lane.b32.xlu0 %v203, 127
  %v207 = vpop.permute.xlu0 %206
  %208 = vrot.lane.b32.xlu0 %v204, 127
  %v209 = vpop.permute.xlu0 %208
  %210 = vrot.lane.b32.xlu0 %v205, 127
  %v211 = vpop.permute.xlu0 %210
  %vm212 = vcmask 1039360
  %v213 = vsel %vm212, %v207, %v209
  %v214 = vsel %vm212, %v209, %v211
  %v217 = vsel %vm122, 0.0, %v213
  %v218 = vsel %vm123, 0.0, %v214
  %v221 = vrot.slane %v217, 1
  %v222 = vrot.slane %v218, 1
  %225 = vst [vmem:[#allocation3 + $0x20] sm:$0x80] %v221
  %226 = vst [vmem:[#allocation3 + $0x28] sm:$0x80] %v222
  %227 = vst [vmem:[#allocation3 + $0x40] sm:$0x3] %v221
  %228 = vst [vmem:[#allocation3 + $0x48] sm:$0x3] %v222
  %v229 = vld [vmem:[#allocation2 + $0x4] sm:$0x77]
  %v230 = vld [vmem:[#allocation2 + $0xc] sm:$0x7]
  %233 = vst [vmem:[#allocation1] ss:$2 sm:$0xff] %v229
  %s234 = scalar_lea.vmem [#allocation1], 16
  %235 = vst [vmem:[%s234] ss:$2 sm:$0xff] %v230
  %v236 = vld.sshfl [vmem:[#allocation1] sm:$0xff pattern:$0x75316420]
  %v237 = vld.sshfl [vmem:[#allocation1 + $0x8] sm:$0xff pattern:$0x75316420]
  %v238 = vld.sshfl [vmem:[#allocation1 + $0x10] sm:$0xff pattern:$0x75316420]
  %239 = vrot.lane.b32.xlu0 %v236, 113
  %v240 = vpop.permute.xlu0 %239
  %241 = vrot.lane.b32.xlu0 %v237, 113
  %v242 = vpop.permute.xlu0 %241
  %243 = vrot.lane.b32.xlu0 %v238, 113
  %v244 = vpop.permute.xlu0 %243
  %vm245 = vcmask 924672
  %v246 = vsel %vm245, %v240, %v242
  %v247 = vsel %vm245, %v242, %v244
  %v250 = vsel %vm67, 0.0, %v246
  %v251 = vsel %vm68, 0.0, %v247
  %v254 = vrot.slane %v250, 6
  %v255 = vrot.slane %v251, 6
  %258 = vst [vmem:[#allocation3 + $0x40] sm:$0x1c] %v254
  %259 = vst [vmem:[#allocation3 + $0x48] sm:$0x1c] %v255
  %v260 = vld [vmem:[#allocation2 + $0x4] sm:$0x77]
  %v261 = vld [vmem:[#allocation2 + $0xc] sm:$0x7]
  %264 = vst [vmem:[#allocation1] ss:$2 sm:$0xff] %v260
  %s265 = scalar_lea.vmem [#allocation1], 16
  %266 = vst [vmem:[%s265] ss:$2 sm:$0xff] %v261
  %v267 = vld.sshfl [vmem:[#allocation1] sm:$0xff pattern:$0x75316420]
  %v268 = vld.sshfl [vmem:[#allocation1 + $0x8] sm:$0xff pattern:$0x75316420]
  %v269 = vld.sshfl [vmem:[#allocation1 + $0x10] sm:$0xff pattern:$0x75316420]
  %v270 = vrot.slane %v267, 3
  %v271 = vrot.slane %v268, 3
  %v272 = vrot.slane %v269, 3
  %273 = vrot.lane.b32.xlu0 %v270, 112
  %v274 = vpop.permute.xlu0 %273
  %275 = vrot.lane.b32.xlu0 %v271, 112
  %v276 = vpop.permute.xlu0 %275
  %277 = vrot.lane.b32.xlu0 %v272, 112
  %v278 = vpop.permute.xlu0 %277
  %vm279 = vcmask 916480
  %v280 = vsel %vm279, %v274, %v276
  %v281 = vsel %vm279, %v276, %v278
  %284 = vst [vmem:[#allocation3 + $0x40] sm:$0xe0] %v280
  %285 = vst [vmem:[#allocation3 + $0x48] sm:$0xe0] %v281
  %v286 = vld [vmem:[#allocation2 + $0x4] sm:$0x77]
  %v287 = vld [vmem:[#allocation2 + $0xc] sm:$0x7]
  %290 = vst [vmem:[#allocation1] ss:$2 sm:$0xff] %v286
  %s291 = scalar_lea.vmem [#allocation1], 16
  %292 = vst [vmem:[%s291] ss:$2 sm:$0xff] %v287
  %v293 = vld.sshfl [vmem:[#allocation1] sm:$0xff pattern:$0x75316420]
  %v294 = vld.sshfl [vmem:[#allocation1 + $0x8] sm:$0xff pattern:$0x75316420]
  %v295 = vld.sshfl [vmem:[#allocation1 + $0x10] sm:$0xff pattern:$0x75316420]
  %296 = vrot.lane.b32.xlu0 %v293, 111
  %v297 = vpop.permute.xlu0 %296
  %298 = vrot.lane.b32.xlu0 %v294, 111
  %v299 = vpop.permute.xlu0 %298
  %300 = vrot.lane.b32.xlu0 %v295, 111
  %v301 = vpop.permute.xlu0 %300
  %vm302 = vcmask 908288
  %v303 = vsel %vm302, %v297, %v299
  %v304 = vsel %vm302, %v299, %v301
  %v307 = vsel %vm122, 0.0, %v303
  %v308 = vsel %vm123, 0.0, %v304
  %309 = vst [vmem:[#allocation3 + $0x60] sm:$0x7] %v307
  %310 = vst [vmem:[#allocation3 + $0x68] sm:$0x7] %v308
  %v311 = vld [vmem:[%s50] sm:$0x77]
  %v312 = vld [vmem:[%s50 + $0x8] sm:$0x7]
  %315 = vst [vmem:[#allocation1] ss:$2 sm:$0xff] %v311
  %s316 = scalar_lea.vmem [#allocation1], 16
  %317 = vst [vmem:[%s316] ss:$2 sm:$0xff] %v312
  %v318 = vld.sshfl [vmem:[#allocation1] sm:$0xff pattern:$0x75316420]
  %v319 = vld.sshfl [vmem:[#allocation1 + $0x8] sm:$0xff pattern:$0x75316420]
  %v320 = vld.sshfl [vmem:[#allocation1 + $0x10] sm:$0xff pattern:$0x75316420]
  %321 = vrot.lane.b32.xlu0 %v318, 17
  %v322 = vpop.permute.xlu0 %321
  %323 = vrot.lane.b32.xlu0 %v319, 17
  %v324 = vpop.permute.xlu0 %323
  %325 = vrot.lane.b32.xlu0 %v320, 17
  %v326 = vpop.permute.xlu0 %325
  %v327 = vsel %vm83, %v322, %v324
  %v328 = vsel %vm83, %v324, %v326
  %v331 = vsel %vm67, 0.0, %v327
  %v332 = vsel %vm68, 0.0, %v328
  %333 = vst [vmem:[#allocation3 + $0x10] sm:$0x7] %v331
  %334 = vst [vmem:[#allocation3 + $0x18] sm:$0x7] %v332
  %v335 = vld [vmem:[%s50] sm:$0x77]
  %v336 = vld [vmem:[%s50 + $0x8] sm:$0x7]
  %339 = vst [vmem:[#allocation1] ss:$2 sm:$0xff] %v335
  %s340 = scalar_lea.vmem [#allocation1], 16
  %341 = vst [vmem:[%s340] ss:$2 sm:$0xff] %v336
  %v342 = vld.sshfl [vmem:[#allocation1] sm:$0xff pattern:$0x75316420]
  %v343 = vld.sshfl [vmem:[#allocation1 + $0x8] sm:$0xff pattern:$0x75316420]
  %v344 = vld.sshfl [vmem:[#allocation1 + $0x10] sm:$0xff pattern:$0x75316420]
  %v345 = vrot.slane %v342, 5
  %v346 = vrot.slane %v343, 5
  %v347 = vrot.slane %v344, 5
  %348 = vrot.lane.b32.xlu0 %v345, 16
  %v349 = vpop.permute.xlu0 %348
  %350 = vrot.lane.b32.xlu0 %v346, 16
  %v351 = vpop.permute.xlu0 %350
  %352 = vrot.lane.b32.xlu0 %v347, 16
  %v353 = vpop.permute.xlu0 %352
  %v354 = vsel %vm111, %v349, %v351
  %v355 = vsel %vm111, %v351, %v353
  %358 = vst [vmem:[#allocation3 + $0x10] sm:$0x38] %v354
  %359 = vst [vmem:[#allocation3 + $0x18] sm:$0x38] %v355
  %v360 = vld [vmem:[%s50] sm:$0x77]
  %v361 = vld [vmem:[%s50 + $0x8] sm:$0x7]
  %364 = vst [vmem:[#allocation1] ss:$2 sm:$0xff] %v360
  %s365 = scalar_lea.vmem [#allocation1], 16
  %366 = vst [vmem:[%s365] ss:$2 sm:$0xff] %v361
  %v367 = vld.sshfl [vmem:[#allocation1] sm:$0xff pattern:$0x75316420]
  %v368 = vld.sshfl [vmem:[#allocation1 + $0x8] sm:$0xff pattern:$0x75316420]
  %v369 = vld.sshfl [vmem:[#allocation1 + $0x10] sm:$0xff pattern:$0x75316420]
  %370 = vrot.lane.b32.xlu0 %v367, 15
  %v371 = vpop.permute.xlu0 %370
  %372 = vrot.lane.b32.xlu0 %v368, 15
  %v373 = vpop.permute.xlu0 %372
  %374 = vrot.lane.b32.xlu0 %v369, 15
  %v375 = vpop.permute.xlu0 %374
  %v376 = vsel %vm138, %v371, %v373
  %v377 = vsel %vm138, %v373, %v375
  %v380 = vsel %vm122, 0.0, %v376
  %v381 = vsel %vm123, 0.0, %v377
  %v384 = vrot.slane %v380, 2
  %v385 = vrot.slane %v381, 2
  %388 = vst [vmem:[#allocation3 + $0x10] sm:$0xc0] %v384
  %389 = vst [vmem:[#allocation3 + $0x18] sm:$0xc0] %v385
  %390 = vst [vmem:[#allocation3 + $0x30] sm:$0x1] %v384
  %391 = vst [vmem:[#allocation3 + $0x38] sm:$0x1] %v385
  %v392 = vld [vmem:[%s50] sm:$0x77]
  %v393 = vld [vmem:[%s50 + $0x8] sm:$0x7]
  %396 = vst [vmem:[#allocation1] ss:$2 sm:$0xff] %v392
  %s397 = scalar_lea.vmem [#allocation1], 16
  %398 = vst [vmem:[%s397] ss:$2 sm:$0xff] %v393
  %v399 = vld.sshfl [vmem:[#allocation1] sm:$0xff pattern:$0x75316420]
  %v400 = vld.sshfl [vmem:[#allocation1 + $0x8] sm:$0xff pattern:$0x75316420]
  %v401 = vld.sshfl [vmem:[#allocation1 + $0x10] sm:$0xff pattern:$0x75316420]
  %402 = vrot.lane.b32.xlu0 %v399, 1
  %v403 = vpop.permute.xlu0 %402
  %404 = vrot.lane.b32.xlu0 %v400, 1
  %v405 = vpop.permute.xlu0 %404
  %406 = vrot.lane.b32.xlu0 %v401, 1
  %v407 = vpop.permute.xlu0 %406
  %v408 = vsel %vm171, %v403, %v405
  %v409 = vsel %vm171, %v405, %v407
  %v412 = vsel %vm67, 0.0, %v408
  %v413 = vsel %vm68, 0.0, %v409
  %v416 = vrot.slane %v412, 7
  %v417 = vrot.slane %v413, 7
  %420 = vst [vmem:[#allocation3 + $0x30] sm:$0xe] %v416
  %421 = vst [vmem:[#allocation3 + $0x38] sm:$0xe] %v417
  %v422 = vld [vmem:[%s50 + $0x4] sm:$0x77]
  %s424 = scalar_lea.vmem [#allocation1], 1
  %425 = vst [vmem:[%s424] ss:$2 sm:$0xff] %v422
  %v426 = vld.sshfl [vmem:[#allocation1] sm:$0xff pattern:$0x75316420]
  %v427 = vld.sshfl [vmem:[#allocation1 + $0x8] sm:$0xff pattern:$0x75316420]
  %430 = vst [vmem:[#allocation3 + $0x30] sm:$0x70] %v426
  %431 = vst [vmem:[#allocation3 + $0x38] sm:$0x70] %v427
  %v432 = vld [vmem:[%s50 + $0x4] sm:$0x77]
  %v433 = vld [vmem:[%s50 + $0xc] sm:$0x7]
  %436 = vst [vmem:[#allocation1] ss:$2 sm:$0xff] %v432
  %s437 = scalar_lea.vmem [#allocation1], 16
  %438 = vst [vmem:[%s437] ss:$2 sm:$0xff] %v433
  %v439 = vld.sshfl [vmem:[#allocation1] sm:$0xff pattern:$0x75316420]
  %v440 = vld.sshfl [vmem:[#allocation1 + $0x8] sm:$0xff pattern:$0x75316420]
  %v441 = vld.sshfl [vmem:[#allocation1 + $0x10] sm:$0xff pattern:$0x75316420]
  %442 = vrot.lane.b32.xlu0 %v439, 127
  %v443 = vpop.permute.xlu0 %442
  %444 = vrot.lane.b32.xlu0 %v440, 127
  %v445 = vpop.permute.xlu0 %444
  %446 = vrot.lane.b32.xlu0 %v441, 127
  %v447 = vpop.permute.xlu0 %446
  %v448 = vsel %vm212, %v443, %v445
  %v449 = vsel %vm212, %v445, %v447
  %v452 = vsel %vm122, 0.0, %v448
  %v453 = vsel %vm123, 0.0, %v449
  %v456 = vrot.slane %v452, 1
  %v457 = vrot.slane %v453, 1
  %460 = vst [vmem:[#allocation3 + $0x30] sm:$0x80] %v456
  %461 = vst [vmem:[#allocation3 + $0x38] sm:$0x80] %v457
  %462 = vst [vmem:[#allocation3 + $0x50] sm:$0x3] %v456
  %463 = vst [vmem:[#allocation3 + $0x58] sm:$0x3] %v457
  %v464 = vld [vmem:[%s50 + $0x4] sm:$0x77]
  %v465 = vld [vmem:[%s50 + $0xc] sm:$0x7]
  %468 = vst [vmem:[#allocation1] ss:$2 sm:$0xff] %v464
  %s469 = scalar_lea.vmem [#allocation1], 16
  %470 = vst [vmem:[%s469] ss:$2 sm:$0xff] %v465
  %v471 = vld.sshfl [vmem:[#allocation1] sm:$0xff pattern:$0x75316420]
  %v472 = vld.sshfl [vmem:[#allocation1 + $0x8] sm:$0xff pattern:$0x75316420]
  %v473 = vld.sshfl [vmem:[#allocation1 + $0x10] sm:$0xff pattern:$0x75316420]
  %474 = vrot.lane.b32.xlu0 %v471, 113
  %v475 = vpop.permute.xlu0 %474
  %476 = vrot.lane.b32.xlu0 %v472, 113
  %v477 = vpop.permute.xlu0 %476
  %478 = vrot.lane.b32.xlu0 %v473, 113
  %v479 = vpop.permute.xlu0 %478
  %v480 = vsel %vm245, %v475, %v477
  %v481 = vsel %vm245, %v477, %v479
  %v484 = vsel %vm67, 0.0, %v480
  %v485 = vsel %vm68, 0.0, %v481
  %v488 = vrot.slane %v484, 6
  %v489 = vrot.slane %v485, 6
  %492 = vst [vmem:[#allocation3 + $0x50] sm:$0x1c] %v488
  %493 = vst [vmem:[#allocation3 + $0x58] sm:$0x1c] %v489
  %v494 = vld [vmem:[%s50 + $0x4] sm:$0x77]
  %v495 = vld [vmem:[%s50 + $0xc] sm:$0x7]
  %498 = vst [vmem:[#allocation1] ss:$2 sm:$0xff] %v494
  %s499 = scalar_lea.vmem [#allocation1], 16
  %500 = vst [vmem:[%s499] ss:$2 sm:$0xff] %v495
  %v501 = vld.sshfl [vmem:[#allocation1] sm:$0xff pattern:$0x75316420]
  %v502 = vld.sshfl [vmem:[#allocation1 + $0x8] sm:$0xff pattern:$0x75316420]
  %v503 = vld.sshfl [vmem:[#allocation1 + $0x10] sm:$0xff pattern:$0x75316420]
  %v504 = vrot.slane %v501, 3
  %v505 = vrot.slane %v502, 3
  %v506 = vrot.slane %v503, 3
  %507 = vrot.lane.b32.xlu0 %v504, 112
  %v508 = vpop.permute.xlu0 %507
  %509 = vrot.lane.b32.xlu0 %v505, 112
  %v510 = vpop.permute.xlu0 %509
  %511 = vrot.lane.b32.xlu0 %v506, 112
  %v512 = vpop.permute.xlu0 %511
  %v513 = vsel %vm279, %v508, %v510
  %v514 = vsel %vm279, %v510, %v512
  %517 = vst [vmem:[#allocation3 + $0x50] sm:$0xe0] %v513
  %518 = vst [vmem:[#allocation3 + $0x58] sm:$0xe0] %v514
  %v519 = vld [vmem:[%s50 + $0x4] sm:$0x77]
  %v520 = vld [vmem:[%s50 + $0xc] sm:$0x7]
  %523 = vst [vmem:[#allocation1] ss:$2 sm:$0xff] %v519
  %s524 = scalar_lea.vmem [#allocation1], 16
  %525 = vst [vmem:[%s524] ss:$2 sm:$0xff] %v520
  %v526 = vld.sshfl [vmem:[#allocation1] sm:$0xff pattern:$0x75316420]
  %v527 = vld.sshfl [vmem:[#allocation1 + $0x8] sm:$0xff pattern:$0x75316420]
  %v528 = vld.sshfl [vmem:[#allocation1 + $0x10] sm:$0xff pattern:$0x75316420]
  %529 = vrot.lane.b32.xlu0 %v526, 111
  %v530 = vpop.permute.xlu0 %529
  %531 = vrot.lane.b32.xlu0 %v527, 111
  %v532 = vpop.permute.xlu0 %531
  %533 = vrot.lane.b32.xlu0 %v528, 111
  %v534 = vpop.permute.xlu0 %533
  %v535 = vsel %vm302, %v530, %v532
  %v536 = vsel %vm302, %v532, %v534
  %v539 = vsel %vm122, 0.0, %v535
  %v540 = vsel %vm123, 0.0, %v536
  %541 = vst [vmem:[#allocation3 + $0x70] sm:$0x7] %v539
  %542 = vst [vmem:[#allocation3 + $0x78] sm:$0x7] %v540
  %v543 = vld [vmem:[%s1] sm:$0xff]
  %v544 = vld [vmem:[%s1 + $0x8] sm:$0xff]
  %v545 = vld [vmem:[%s1 + $0x10] sm:$0xff]
  %v546 = vld [vmem:[%s1 + $0x18] sm:$0xff]
  %v547 = vld [vmem:[%s1 + $0x20] sm:$0xff]
  %v548 = vld [vmem:[%s1 + $0x28] sm:$0xff]
  %v549 = vld [vmem:[%s1 + $0x30] sm:$0xff]
  %v550 = vld [vmem:[%s1 + $0x38] sm:$0xff]
  %v551 = vld [vmem:[#allocation3] sm:$0xff]
  %v552 = vld [vmem:[#allocation3 + $0x8] sm:$0xff]
  %v553 = vld [vmem:[#allocation3 + $0x10] sm:$0xff]
  %v554 = vld [vmem:[#allocation3 + $0x18] sm:$0xff]
  %v555 = vld [vmem:[#allocation3 + $0x20] sm:$0xff]
  %v556 = vld [vmem:[#allocation3 + $0x28] sm:$0xff]
  %v557 = vld [vmem:[#allocation3 + $0x30] sm:$0xff]
  %v558 = vld [vmem:[#allocation3 + $0x38] sm:$0xff]
  %v559 = vld [vmem:[#allocation3 + $0x40] sm:$0xff]
  %v560 = vld [vmem:[#allocation3 + $0x48] sm:$0xff]
  %v561 = vld [vmem:[#allocation3 + $0x50] sm:$0xff]
  %v562 = vld [vmem:[#allocation3 + $0x58] sm:$0xff]
  %v563 = vld [vmem:[#allocation3 + $0x60] sm:$0xff]
  %v564 = vld [vmem:[#allocation3 + $0x68] sm:$0xff]
  %v565 = vld [vmem:[#allocation3 + $0x70] sm:$0xff]
  %v566 = vld [vmem:[#allocation3 + $0x78] sm:$0xff]
  %vm567 = vcmask 261120
  %v569 = vsel %vm567, %v543, 0
  %v572 = vsel %vm567, %v544, 0
  %v575 = vsel %vm567, %v545, 0
  %v578 = vsel %vm567, %v546, 0
  %v581 = vsel %vm567, %v547, 0
  %v584 = vsel %vm567, %v548, 0
  %v587 = vsel %vm567, %v549, 0
  %v590 = vsel %vm567, %v550, 0
  %592 = vmatpush.msra.mxu0 0.0
  %593 = vmatpush.msra.mxu0 0.0
  %594 = vmatpush.msra.mxu0 0.0
  %595 = vmatpush.msra.mxu0 0.0
  %596 = vmatpush.msra.mxu0 0.0
  %597 = vmatpush.msra.mxu0 0.0
  %598 = vmatpush.msra.mxu0 0.0
  %599 = vmatpush.msra.mxu0 0.0
  %600 = vmatpush.msra.mxu0 0.0
  %601 = vmatpush.msra.mxu0 0.0
  %602 = vmatpush.msra.mxu0 0.0
  %603 = vmatpush.msra.mxu0 0.0
  %604 = vmatpush.msra.mxu0 %v563
  %605 = vmatpush.msra.mxu0 %v559
  %606 = vmatpush.msra.mxu0 %v555
  %607 = vmatpush.msra.mxu0 %v551
  %608 = vmatmul.f32.gmra.mxu0 %v569
  %v609 = vpop.f32.mrf.mxu0
  %v610 = vadd.f32 0.0, %v609
  %611 = vmatmul.f32.gmra.mxu0 %v572
  %v612 = vpop.f32.mrf.mxu0
  %v613 = vadd.f32 0.0, %v612
  %614 = vmatmul.f32.gmra.mxu0 %v575
  %v615 = vpop.f32.mrf.mxu0
  %v616 = vadd.f32 0.0, %v615
  %617 = vmatmul.f32.gmra.mxu0 %v578
  %v618 = vpop.f32.mrf.mxu0
  %v619 = vadd.f32 0.0, %v618
  %620 = vmatmul.f32.gmra.mxu0 %v581
  %v621 = vpop.f32.mrf.mxu0
  %v622 = vadd.f32 0.0, %v621
  %623 = vmatmul.f32.gmra.mxu0 %v584
  %v624 = vpop.f32.mrf.mxu0
  %v625 = vadd.f32 0.0, %v624
  %626 = vmatmul.f32.gmra.mxu0 %v587
  %v627 = vpop.f32.mrf.mxu0
  %v628 = vadd.f32 0.0, %v627
  %629 = vmatmul.f32.gmra.mxu0 %v590
  %v630 = vpop.f32.mrf.mxu0
  %v631 = vadd.f32 0.0, %v630
  %632 = vdwg.mxu0
  %633 = vmatpush.msra.mxu0 0.0
  %634 = vmatpush.msra.mxu0 0.0
  %635 = vmatpush.msra.mxu0 0.0
  %636 = vmatpush.msra.mxu0 0.0
  %637 = vmatpush.msra.mxu0 0.0
  %638 = vmatpush.msra.mxu0 0.0
  %639 = vmatpush.msra.mxu0 0.0
  %640 = vmatpush.msra.mxu0 0.0
  %641 = vmatpush.msra.mxu0 0.0
  %642 = vmatpush.msra.mxu0 0.0
  %643 = vmatpush.msra.mxu0 0.0
  %644 = vmatpush.msra.mxu0 0.0
  %645 = vmatpush.msra.mxu0 %v564
  %646 = vmatpush.msra.mxu0 %v560
  %647 = vmatpush.msra.mxu0 %v556
  %648 = vmatpush.msra.mxu0 %v552
  %649 = vmatmul.f32.gmra.mxu0 %v569
  %v650 = vpop.f32.mrf.mxu0
  %v651 = vadd.f32 0.0, %v650
  %652 = vmatmul.f32.gmra.mxu0 %v572
  %v653 = vpop.f32.mrf.mxu0
  %v654 = vadd.f32 0.0, %v653
  %655 = vmatmul.f32.gmra.mxu0 %v575
  %v656 = vpop.f32.mrf.mxu0
  %v657 = vadd.f32 0.0, %v656
  %658 = vmatmul.f32.gmra.mxu0 %v578
  %v659 = vpop.f32.mrf.mxu0
  %v660 = vadd.f32 0.0, %v659
  %661 = vmatmul.f32.gmra.mxu0 %v581
  %v662 = vpop.f32.mrf.mxu0
  %v663 = vadd.f32 0.0, %v662
  %664 = vmatmul.f32.gmra.mxu0 %v584
  %v665 = vpop.f32.mrf.mxu0
  %v666 = vadd.f32 0.0, %v665
  %667 = vmatmul.f32.gmra.mxu0 %v587
  %v668 = vpop.f32.mrf.mxu0
  %v669 = vadd.f32 0.0, %v668
  %670 = vmatmul.f32.gmra.mxu0 %v590
  %v671 = vpop.f32.mrf.mxu0
  %v672 = vadd.f32 0.0, %v671
  %673 = vdwg.mxu0
  %674 = vmatpush.msra.mxu0 0.0
  %675 = vmatpush.msra.mxu0 0.0
  %676 = vmatpush.msra.mxu0 0.0
  %677 = vmatpush.msra.mxu0 0.0
  %678 = vmatpush.msra.mxu0 0.0
  %679 = vmatpush.msra.mxu0 0.0
  %680 = vmatpush.msra.mxu0 0.0
  %681 = vmatpush.msra.mxu0 0.0
  %682 = vmatpush.msra.mxu0 0.0
  %683 = vmatpush.msra.mxu0 0.0
  %684 = vmatpush.msra.mxu0 0.0
  %685 = vmatpush.msra.mxu0 0.0
  %686 = vmatpush.msra.mxu0 %v565
  %687 = vmatpush.msra.mxu0 %v561
  %688 = vmatpush.msra.mxu0 %v557
  %689 = vmatpush.msra.mxu0 %v553
  %690 = vmatmul.f32.gmra.mxu0 %v569
  %v691 = vpop.f32.mrf.mxu0
  %v692 = vadd.f32 0.0, %v691
  %693 = vmatmul.f32.gmra.mxu0 %v572
  %v694 = vpop.f32.mrf.mxu0
  %v695 = vadd.f32 0.0, %v694
  %696 = vmatmul.f32.gmra.mxu0 %v575
  %v697 = vpop.f32.mrf.mxu0
  %v698 = vadd.f32 0.0, %v697
  %699 = vmatmul.f32.gmra.mxu0 %v578
  %v700 = vpop.f32.mrf.mxu0
  %v701 = vadd.f32 0.0, %v700
  %702 = vmatmul.f32.gmra.mxu0 %v581
  %v703 = vpop.f32.mrf.mxu0
  %v704 = vadd.f32 0.0, %v703
  %705 = vmatmul.f32.gmra.mxu0 %v584
  %v706 = vpop.f32.mrf.mxu0
  %v707 = vadd.f32 0.0, %v706
  %708 = vmatmul.f32.gmra.mxu0 %v587
  %v709 = vpop.f32.mrf.mxu0
  %v710 = vadd.f32 0.0, %v709
  %711 = vmatmul.f32.gmra.mxu0 %v590
  %v712 = vpop.f32.mrf.mxu0
  %v713 = vadd.f32 0.0, %v712
  %714 = vdwg.mxu0
  %715 = vmatpush.msra.mxu0 0.0
  %716 = vmatpush.msra.mxu0 0.0
  %717 = vmatpush.msra.mxu0 0.0
  %718 = vmatpush.msra.mxu0 0.0
  %719 = vmatpush.msra.mxu0 0.0
  %720 = vmatpush.msra.mxu0 0.0
  %721 = vmatpush.msra.mxu0 0.0
  %722 = vmatpush.msra.mxu0 0.0
  %723 = vmatpush.msra.mxu0 0.0
  %724 = vmatpush.msra.mxu0 0.0
  %725 = vmatpush.msra.mxu0 0.0
  %726 = vmatpush.msra.mxu0 0.0
  %727 = vmatpush.msra.mxu0 %v566
  %728 = vmatpush.msra.mxu0 %v562
  %729 = vmatpush.msra.mxu0 %v558
  %730 = vmatpush.msra.mxu0 %v554
  %731 = vmatmul.f32.gmra.mxu0 %v569
  %v732 = vpop.f32.mrf.mxu0
  %v733 = vadd.f32 0.0, %v732
  %734 = vmatmul.f32.gmra.mxu0 %v572
  %v735 = vpop.f32.mrf.mxu0
  %v736 = vadd.f32 0.0, %v735
  %737 = vmatmul.f32.gmra.mxu0 %v575
  %v738 = vpop.f32.mrf.mxu0
  %v739 = vadd.f32 0.0, %v738
  %740 = vmatmul.f32.gmra.mxu0 %v578
  %v741 = vpop.f32.mrf.mxu0
  %v742 = vadd.f32 0.0, %v741
  %743 = vmatmul.f32.gmra.mxu0 %v581
  %v744 = vpop.f32.mrf.mxu0
  %v745 = vadd.f32 0.0, %v744
  %746 = vmatmul.f32.gmra.mxu0 %v584
  %v747 = vpop.f32.mrf.mxu0
  %v748 = vadd.f32 0.0, %v747
  %749 = vmatmul.f32.gmra.mxu0 %v587
  %v750 = vpop.f32.mrf.mxu0
  %v751 = vadd.f32 0.0, %v750
  %752 = vmatmul.f32.gmra.mxu0 %v590
  %v753 = vpop.f32.mrf.mxu0
  %v754 = vadd.f32 0.0, %v753
  %755 = vdwg.mxu0
  %756 = vst [vmem:[%s2] sm:$0xff] %v610
  %757 = vst [vmem:[%s2 + $0x8] sm:$0xff] %v651
  %758 = vst [vmem:[%s2 + $0x10] sm:$0xff] %v613
  %759 = vst [vmem:[%s2 + $0x18] sm:$0xff] %v654
  %760 = vst [vmem:[%s2 + $0x20] sm:$0xff] %v616
  %761 = vst [vmem:[%s2 + $0x28] sm:$0xff] %v657
  %762 = vst [vmem:[%s2 + $0x30] sm:$0xff] %v619
  %763 = vst [vmem:[%s2 + $0x38] sm:$0xff] %v660
  %764 = vst [vmem:[%s2 + $0x40] sm:$0xff] %v622
  %765 = vst [vmem:[%s2 + $0x48] sm:$0xff] %v663
  %766 = vst [vmem:[%s2 + $0x50] sm:$0xff] %v625
  %767 = vst [vmem:[%s2 + $0x58] sm:$0xff] %v666
  %768 = vst [vmem:[%s2 + $0x60] sm:$0xff] %v628
  %769 = vst [vmem:[%s2 + $0x68] sm:$0xff] %v669
  %770 = vst [vmem:[%s2 + $0x70] sm:$0xff] %v631
  %771 = vst [vmem:[%s2 + $0x78] sm:$0xff] %v672
  %s772 = scalar_lea.vmem %s2, 128
  %773 = vst [vmem:[%s772] sm:$0xff] %v692
  %774 = vst [vmem:[%s772 + $0x8] sm:$0xff] %v733
  %775 = vst [vmem:[%s772 + $0x10] sm:$0xff] %v695
  %776 = vst [vmem:[%s772 + $0x18] sm:$0xff] %v736
  %777 = vst [vmem:[%s772 + $0x20] sm:$0xff] %v698
  %778 = vst [vmem:[%s772 + $0x28] sm:$0xff] %v739
  %779 = vst [vmem:[%s772 + $0x30] sm:$0xff] %v701
  %780 = vst [vmem:[%s772 + $0x38] sm:$0xff] %v742
  %781 = vst [vmem:[%s772 + $0x40] sm:$0xff] %v704
  %782 = vst [vmem:[%s772 + $0x48] sm:$0xff] %v745
  %783 = vst [vmem:[%s772 + $0x50] sm:$0xff] %v707
  %784 = vst [vmem:[%s772 + $0x58] sm:$0xff] %v748
  %785 = vst [vmem:[%s772 + $0x60] sm:$0xff] %v710
  %786 = vst [vmem:[%s772 + $0x68] sm:$0xff] %v751
  %787 = vst [vmem:[%s772 + $0x70] sm:$0xff] %v713
  %788 = vst [vmem:[%s772 + $0x78] sm:$0xff] %v754
  // Predicated region
  $region10: #{conv2d_3x3_same.1} parent=0 // pred_check
    _
  $region11: #{conv2d_3x3_same.1} parent=0 // pred_check_branch
    %790 = sbr.rel (0) target = $region13
  $region12: #{conv2d_3x3_same.1} parent=0 // pred_region
    _
  $region13: #{conv2d_3x3_same.1} parent=0 // pred_fallthru
    _
  // Predicated region
  $region14: #{conv2d_3x3_same.1} parent=0 // pred_check
    _
  $region15: #{conv2d_3x3_same.1} parent=0 // pred_check_branch
    %792 = sbr.rel (0) target = $region17
  $region16: #{conv2d_3x3_same.1} parent=0 // pred_region
    _
  $region17: #{conv2d_3x3_same.1} parent=0 // pred_fallthru
    _

</llo_original>
